<compile_context>
chip_gen: v5e
topology: v5e:2x2
jax: 0.10.0
libtpu: 0.0.40
codegen_flags: <defaults>
</compile_context>

<pallas_src>
import jax
import jax.numpy as jnp
from jax.experimental import pallas as pl
from jax.experimental.pallas import tpu as pltpu


def _drop_path_kernel(scale_ref, x_ref, o_ref):
    """out = x * scale  (scale already holds mask / keep_prob).

    scale_ref : (1, TC)  per-column scale, broadcast over rows
    x_ref     : (TR, TC) tile of the (L, B*D) view of x
    o_ref     : (TR, TC) tile of the output
    """
    o_ref[...] = x_ref[...] * scale_ref[...]


def _round_down(x, m):
    return (x // m) * m


def _sublane(dtype):
    """Native sublane tile rows: 8 for 32-bit, 16 for 16-bit, 32 for 8-bit."""
    return {4: 8, 2: 16, 1: 32}.get(jnp.dtype(dtype).itemsize, 8)


def _tile_target_bytes():
    """Per-tile byte target: ~4 MiB on v6e/v7x, ~2 MiB on v5e."""
    kind = ""
    try:
        kind = jax.devices()[0].device_kind.lower()
    except Exception:
        pass
    if ("v5 lite" in kind) or ("v5e" in kind) or ("v5lite" in kind):
        return 2 << 20   # ~0.8 TB/s HBM: 2 MiB already ~85-90% of roofline
    return 4 << 20       # v6e/v7x: bigger tiles amortize per-step overhead


def _choose_tiles(rows, cols, itemsize, sub, target_bytes):
    """Pick (row_tile, col_tile) for the (rows, cols) lane-dense view."""
    row_bytes = max(1, cols * itemsize)

    # Preferred: full-width row blocks -> fully contiguous HBM DMAs, the
    # (1, cols) scale is fetched exactly once, lane extent is full-dim.
    tr_full = _round_down(target_bytes // row_bytes, sub)
    if tr_full >= sub:
        tc = cols
        if tr_full >= rows:
            tr = rows
            if rows >= 2 * sub:
                # keep >= 2 row blocks so v7x's two TensorCores both get work
                tr = max(sub, _round_down(-(-rows // 2), sub))
        else:
            tr = tr_full
        return tr, tc

    # A single row exceeds the budget: column-tile. Prefer the largest
    # 128-multiple divisor of cols (no padded final block); otherwise any
    # 128-multiple block (legal; partial last block is masked - perf only).
    max_tc = max(128, _round_down(target_bytes // (sub * itemsize), 128))
    tc = 0
    cand = _round_down(min(max_tc, cols), 128)
    while cand >= 128:
        if cols % cand == 0:
            tc = cand
            break
        cand -= 128
    if tc == 0:
        tc = min(max_tc, max(128, _round_down(cols, 128)))
    tr = max(sub, _round_down(target_bytes // (tc * itemsize), sub))
    if tr >= rows:
        tr = rows
    return tr, tc


def drop_path(x, key, drop_prob: float = 0.0, training: bool = False, *,
              force_pallas: bool = False, donate: bool = False,
              block_rows=None, block_cols=None):
    """JAX/Pallas equivalent of the PyTorch drop_path function.

    x : (L, B, D) sequence-first tensor; paths are dropped per batch element
    (axis 1), survivors are rescaled by 1/keep_prob.
    """
    if drop_prob == 0.0 or not training:
        return x

    keep_prob = 1.0 - drop_prob
    L, B, D = x.shape

    # Per-sample keep mask in float32 (avoids coarse rounding of the uniform
    # draws when x is bf16), folded with 1/keep_prob into one scale.
    u = jax.random.uniform(key, (B,), dtype=jnp.float32)
    scale = (jnp.floor(keep_prob + u) / keep_prob).astype(x.dtype)

    # Small tensors: kernel launch + per-step overhead dwarf the traffic.
    # TODO(synk): when DropPath sits between other fusible elementwise/matmul
    # ops, prefer this fused multiply at any size - a standalone kernel's floor
    # is an unavoidable extra HBM read+write of x.
    nbytes = x.size * x.dtype.itemsize
    if not force_pallas and nbytes < (1 << 20):
        return x * scale[None, :, None]

    # Lane-dense 2D view (pure reshape): (L, B*D); per-column scale built with
    # broadcast_to (pure layout op) rather than jnp.repeat (gather-style).
    rows, cols = L, B * D
    x2 = x.reshape(rows, cols)
    scale_cols = jnp.broadcast_to(scale[:, None], (B, D)).reshape(1, cols)

    itemsize = x.dtype.itemsize
    sub = _sublane(x.dtype)
    target = _tile_target_bytes()
    tr, tc = _choose_tiles(rows, cols, itemsize, sub, target)
    if block_rows is not None:
        tr = block_rows
    if block_cols is not None:
        tc = block_cols

    # Raise scoped VMEM to 32 MiB (>= default on every gen, <= v7x's 64 MiB
    # physical) and verify the double-buffered working set fits with headroom.
    vmem_limit = 32 << 20
    working_set = 4 * tr * tc * itemsize + 2 * 8 * tc * itemsize
    if working_set > int(0.85 * vmem_limit):
        return x * scale[None, :, None]   # never blow scoped VMEM

    # Columns on the slow grid axis, rows on the fast one: the scale block
    # index is unchanged across inner steps, so it stays VMEM-resident.
    grid = (pl.cdiv(cols, tc), pl.cdiv(rows, tr))

    out2 = pl.pallas_call(
        _drop_path_kernel,
        out_shape=jax.ShapeDtypeStruct((rows, cols), x.dtype),
        grid_spec=pltpu.PrefetchScalarGridSpec(
            num_scalar_prefetch=0,
            grid=grid,
            in_specs=[
                pl.BlockSpec((1, tc), lambda j, i: (0, j)),   # per-column scale
                pl.BlockSpec((tr, tc), lambda j, i: (i, j)),  # x tile
            ],
            out_specs=pl.BlockSpec((tr, tc), lambda j, i: (i, j)),
        ),
        compiler_params=pltpu.CompilerParams(
            dimension_semantics=("parallel", "parallel"),
            vmem_limit_bytes=vmem_limit),
        # Optional in-place write when x's buffer is donatable (cuts peak HBM).
        input_output_aliases=({1: 0} if donate else {}),
    )(scale_cols, x2)

    return out2.reshape(L, B, D)


class DropPath:
    """Drop paths (Stochastic Depth) per sample, Pallas-backed."""

    def __init__(self, drop_prob=None):
        self.drop_prob = drop_prob
        self.training = True

    def __call__(self, x, key, **kwargs):
        p = 0.0 if self.drop_prob is None else float(self.drop_prob)
        return drop_path(x, key, p, self.training, **kwargs)


if __name__ == "__main__":
    root = jax.random.PRNGKey(0)
    kx, ku = jax.random.split(root)

    drop_prob = 0.3
    keep_prob = 1.0 - drop_prob
    module = DropPath(drop_prob)
    module.training = True

    def ref_drop_path(x, key):
        u = jax.random.uniform(key, (x.shape[1],), dtype=jnp.float32)
        s = (jnp.floor(keep_prob + u) / keep_prob).astype(x.dtype)
        return x * s[None, :, None]

    # 1) Pallas path, lane-dense shape, f32 (full-width row blocks, >=2 blocks)
    L, B, D = 16, 8, 128
    x = jax.random.normal(kx, (L, B, D), dtype=jnp.float32)
    out = jax.block_until_ready(module(x, ku, force_pallas=True))
    ref = ref_drop_path(x, ku)
    assert out.shape == x.shape and out.dtype == x.dtype
    assert jnp.allclose(out, ref, atol=1e-6, rtol=1e-6)

    # 2) Pallas path, explicitly column-tiled 2-D grid (exercises tc < cols)
    out_ct = jax.block_until_ready(
        module(x, ku, force_pallas=True, block_rows=8, block_cols=128))
    assert jnp.allclose(out_ct, ref, atol=1e-6, rtol=1e-6)

    # 3) Pallas path, bf16 (sublane tile = 16 rows)
    xb = jax.random.normal(kx, (64, 4, 256), dtype=jnp.bfloat16)
    outb = jax.block_until_ready(module(xb, ku, force_pallas=True))
    refb = ref_drop_path(xb, ku)
    assert outb.dtype == jnp.bfloat16
    assert jnp.allclose(outb.astype(jnp.float32), refb.astype(jnp.float32))

    # 4) Pallas path, lane dim not a multiple of 128 (full-dim lane block)
    xo = jax.random.normal(kx, (32, 4, 48), dtype=jnp.float32)
    outo = jax.block_until_ready(module(xo, ku, force_pallas=True))
    refo = ref_drop_path(xo, ku)
    assert jnp.allclose(outo, refo, atol=1e-6, rtol=1e-6)

    # 5) tiny-shape path -> fused jnp expression (no kernel launch)
    xs = jax.random.normal(kx, (8, 2, 32), dtype=jnp.float32)
    outs = jax.block_until_ready(module(xs, ku))
    refs = ref_drop_path(xs, ku)
    assert jnp.allclose(outs, refs, atol=1e-6, rtol=1e-6)

    # 6) eval mode / drop_prob = 0 -> identity (no kernel, as in PyTorch)
    module.training = False
    out_eval = jax.block_until_ready(module(x, ku))
    assert jnp.array_equal(out_eval, x)

    print("KERNEL_OK")
</pallas_src>

<mosaic_0001>
module attributes {stable_mosaic.version = 11 : i64} {
  func.func @_drop_path_kernel(%arg0: i32, %arg1: i32, %arg2: memref<1x1024xf32, #tpu.memory_space<vmem>>, %arg3: memref<8x1024xf32, #tpu.memory_space<vmem>>, %arg4: memref<8x1024xf32, #tpu.memory_space<vmem>>) attributes {dimension_semantics = [#tpu.dimension_semantics<parallel>, #tpu.dimension_semantics<parallel>], iteration_bounds = array<i64: 1, 2>, scalar_prefetch = 0 : i64, scratch_operands = 0 : i64, tpu.core_type = #tpu.core_type<tc>, window_params = [{transform_indices = @transform_0, window_bounds = array<i64: 1, 1024>}, {transform_indices = @transform_1, window_bounds = array<i64: 8, 1024>}, {transform_indices = @transform_2, window_bounds = array<i64: 8, 1024>}]} {
    %c0 = arith.constant 0 : index
    %c0_0 = arith.constant 0 : index
    %0 = vector.load %arg3[%c0, %c0_0] : memref<8x1024xf32, #tpu.memory_space<vmem>>, vector<8x1024xf32>
    %c0_1 = arith.constant 0 : index
    %c0_2 = arith.constant 0 : index
    %1 = vector.load %arg2[%c0_1, %c0_2] : memref<1x1024xf32, #tpu.memory_space<vmem>>, vector<1x1024xf32>
    %2 = vector.broadcast %1 : vector<1x1024xf32> to vector<8x1024xf32>
    %3 = arith.mulf %0, %2 : vector<8x1024xf32>
    %c0_3 = arith.constant 0 : index
    %c0_4 = arith.constant 0 : index
    %4 = vector.load %arg4[%c0_3, %c0_4] : memref<8x1024xf32, #tpu.memory_space<vmem>>, vector<8x1024xf32>
    tpu.vector_store %arg4[%c0_3, %c0_4], %3 {strides = array<i32>} : memref<8x1024xf32, #tpu.memory_space<vmem>>, vector<8x1024xf32>,
    return
  }
  func.func @transform_0(%arg0: i32, %arg1: i32) -> (i32, i32) {
    %c0_i32 = arith.constant 0 : i32
    %c0_i32_0 = arith.constant 0 : i32
    return %c0_i32, %arg0 : i32, i32
  }
  func.func @transform_1(%arg0: i32, %arg1: i32) -> (i32, i32) {
    %c0_i32 = arith.constant 0 : i32
    return %arg1, %arg0 : i32, i32
  }
  func.func @transform_2(%arg0: i32, %arg1: i32) -> (i32, i32) {
    %c0_i32 = arith.constant 0 : i32
    return %arg1, %arg0 : i32, i32
  }
}

</mosaic_0001>

<llo_original>
// kernel: tpu_custom_call.1
$region0: #{tpu_custom_call.1}
  #allocation0 [shape = 'u32[]', space=smem, size = 0x4, offset = 0x4, fixed_abs, tag = 'smem constant byte address 0x4 - core index']
  #allocation1 [shape = 'u32[72,128]{1,0:T(1,128)}', space=vmem, size = 0x9000, scoped, tag = 'internal scratch']
  %s0 = inlined_call_operand.hbm [shape: f32[1,1024], index: 0, kind: input, shape index: {}]
  %s1 = inlined_call_operand.hbm [shape: f32[16,1024], index: 1, kind: input, shape index: {}]
  %s2 = inlined_call_operand.hbm [shape: f32[16,1024], index: 2, kind: output, shape index: {}]
  %s3 = sld [smem:[#allocation0]]
  $region49: #{tpu_custom_call.1} parent=0
    _
  %s5 = ssub.s32 1, %s3
  %s6 = scalar_select 0, %s5, %s3
  $region1: #{tpu_custom_call.1} parent=0
    #allocation2 [shape = 'u8[4096]{0}', space=vmem, size = 0x1000, scoped, tag = 'input window, operand 0, single buffered']
    #allocation3 [shape = 's32[2]{0}', space=sflag, size = 0x8, scoped, tag = 'scoped memory for tpu_custom_call.1']
    #allocation4 [shape = 's32[2]{0}', space=sflag, size = 0x8, scoped, tag = 'scoped memory for tpu_custom_call.1']
    #allocation5 [shape = 'u8[65536]{0}', space=vmem, size = 0x10000, scoped, tag = 'input window, operand 1']
    #allocation6 [shape = 's32[2]{0}', space=sflag, size = 0x8, scoped, tag = 'scoped memory for tpu_custom_call.1']
    #allocation7 [shape = 'u8[65536]{0}', space=vmem, size = 0x10000, scoped, tag = 'output window, operand 0']
    %7 = vsyncpa [#allocation3], 0
    %8 = vsyncpa [#allocation6], 0
    %s9 = scalar_lea.sflag [#allocation6], 1
    %10 = vsyncpa %s9, 0
    %11 = vsyncpa [#allocation4], 0
    %s12 = scalar_lea.sflag [#allocation4], 1
    %13 = vsyncpa %s12, 0
    loop: start=0, step=1, limit=4
    $region2: #{tpu_custom_call.1} parent=1 // loop_pre_header
      _
    $region3: #{tpu_custom_call.1} parent=1 // loop_header
      %s15 = sphi 0, %s19
      %p16 = scmp.ge.s32.totalorder %s15, 4
      %s22 = sphi 0, %s34
      %s23 = sphi 0, %s30
      %s24 = sphi 0, %s22
      %s25 = sphi 0, %s23
      %s26 = sphi 0, %s24
      %s27 = sphi 0, %s25
      %s37 = sphi 0, %s39
      %s40 = sphi 0, %s37
      %s41 = sphi 0, %s40
      %s57 = sphi 0, %s41
      %s65 = sphi 0, %s67
      %s68 = sphi 0, %s65
      %s69 = sphi 0, %s68
      %s85 = sphi 0, %s69
      %s93 = sphi 0, %s95
      %s96 = sphi 0, %s93
      %s97 = sphi 0, %s96
      %s113 = sphi 0, %s97
    $region4: #{tpu_custom_call.1} parent=1 // loop_header_branch
      %18 = sbr.rel (%p16) target = $region8
    $region5: #{tpu_custom_call.1} parent=1 // loop_body
      %s20 = ssub.s32 %s15, 1
      %s21 = ssub.s32 %s15, 2
      %s28 = sadd.s32 1, %s23
      %p29 = scmp.ge.s32.totalorder %s28, 2
      %s30 = scalar_select %p29, 0, %s28
      %s31 = sadd.s32 1, %s22
      %s32 = scalar_select %p29, %s31, %s22
      %p33 = scmp.ge.s32.totalorder %s32, 1
      %s34 = scalar_select %p33, 0, %s32
      %s35 = ssub.s32 %s22, %s34
      %p36 = scmp.eq.s32.totalorder %s35, 0
      %s38 = sadd.s32 %s37, 1
      %s39 = scalar_select %p36, %s37, %s38
      %p42 = pneg %p36
      %p43 = scmp.eq.s32.totalorder %s15, 1
      %p44 = por %p42, %p43
      %p45 = scmp.ne.s32.totalorder %s37, %s40
      %p46 = scmp.eq.s32.totalorder %s15, 0
      %p47 = por %p45, %p46
      %p48 = scmp.ne.s32.totalorder %s37, %s40
      %p49 = scmp.eq.s32.totalorder %s20, 1
      %p50 = por %p48, %p49
      %p51 = scmp.ne.s32.totalorder %s40, %s41
      %p52 = scmp.eq.s32.totalorder %s20, 0
      %p53 = por %p51, %p52
      %p54 = scmp.ne.s32.totalorder %s40, %s41
      %p55 = scmp.eq.s32.totalorder %s21, 1
      %p56 = por %p54, %p55
      %p58 = scmp.ne.s32.totalorder %s41, %s57
      %p59 = scmp.eq.s32.totalorder %s21, 0
      %p60 = por %p58, %p59
      %s61 = ssub.s32 %s23, %s30
      %s62 = ssub.s32 %s22, %s34
      %s63 = sor.u32 %s61, %s62
      %p64 = scmp.eq.s32.totalorder %s63, 0
      %s66 = sadd.s32 %s65, 1
      %s67 = scalar_select %p64, %s65, %s66
      %p70 = pneg %p64
      %p71 = scmp.eq.s32.totalorder %s15, 1
      %p72 = por %p70, %p71
      %p73 = scmp.ne.s32.totalorder %s65, %s68
      %p74 = scmp.eq.s32.totalorder %s15, 0
      %p75 = por %p73, %p74
      %p76 = scmp.ne.s32.totalorder %s65, %s68
      %p77 = scmp.eq.s32.totalorder %s20, 1
      %p78 = por %p76, %p77
      %p79 = scmp.ne.s32.totalorder %s68, %s69
      %p80 = scmp.eq.s32.totalorder %s20, 0
      %p81 = por %p79, %p80
      %p82 = scmp.ne.s32.totalorder %s68, %s69
      %p83 = scmp.eq.s32.totalorder %s21, 1
      %p84 = por %p82, %p83
      %p86 = scmp.ne.s32.totalorder %s69, %s85
      %p87 = scmp.eq.s32.totalorder %s21, 0
      %p88 = por %p86, %p87
      %s89 = ssub.s32 %s23, %s30
      %s90 = ssub.s32 %s22, %s34
      %s91 = sor.u32 %s89, %s90
      %p92 = scmp.eq.s32.totalorder %s91, 0
      %s94 = sadd.s32 %s93, 1
      %s95 = scalar_select %p92, %s93, %s94
      %p98 = pneg %p92
      %p99 = scmp.eq.s32.totalorder %s15, 1
      %p100 = por %p98, %p99
      %p101 = scmp.ne.s32.totalorder %s93, %s96
      %p102 = scmp.eq.s32.totalorder %s15, 0
      %p103 = por %p101, %p102
      %p104 = scmp.ne.s32.totalorder %s93, %s96
      %p105 = scmp.eq.s32.totalorder %s20, 1
      %p106 = por %p104, %p105
      %p107 = scmp.ne.s32.totalorder %s96, %s97
      %p108 = scmp.eq.s32.totalorder %s20, 0
      %p109 = por %p107, %p108
      %p110 = scmp.ne.s32.totalorder %s96, %s97
      %p111 = scmp.eq.s32.totalorder %s21, 1
      %p112 = por %p110, %p111
      %p114 = scmp.ne.s32.totalorder %s97, %s113
      %p115 = scmp.eq.s32.totalorder %s21, 0
      %p116 = por %p114, %p115
      %p117 = scmp.le.s32.totalorder 1, %s15
      %p118 = scmp.lt.s32.totalorder %s15, 3
      %p119 = pnand %p117, %p118
      %p120 = pneg %p119
      // Predicated region
      $region9: #{tpu_custom_call.1} parent=5 // pred_check
        _
      $region10: #{tpu_custom_call.1} parent=5 // pred_check_branch
        %122 = sbr.rel (%p119) target = $region12
      $region11: #{tpu_custom_call.1} parent=5 // pred_region
        %s123 = ssub.s32 %s15, 1
        // Predicated region
        $region13: #{tpu_custom_call.1} parent=11 // pred_check
          %p124 = pneg %p53
        $region14: #{tpu_custom_call.1} parent=11 // pred_check_branch
          %126 = sbr.rel (%p124) target = $region16
        $region15: #{tpu_custom_call.1} parent=11 // pred_region
          %s127 = smul.u32 8, %s24
          %129 = vsyncadd [#allocation3], 0
          %s130 = scalar_lea.hbm %s0, %s127
          %s132 = sshll.u32 %s130, 4
          %s133 = int_to_ptr.hbm [resolvable:$true] %s132
          %s134 = sshll.u32 [#allocation2], 4
          %s135 = int_to_ptr.vmem [resolvable:$true] %s134
          %137 = dma.hbm_to_vmem [thread:$0]  %s133, 128, %s135, [#allocation3]
        $region16: #{tpu_custom_call.1} parent=11 // pred_fallthru
          _
      $region12: #{tpu_custom_call.1} parent=5 // pred_fallthru
        _
      %p138 = scmp.lt.s32.totalorder %s15, 2
      // Predicated region
      $region17: #{tpu_custom_call.1} parent=5 // pred_check
        %p139 = pneg %p138
      $region18: #{tpu_custom_call.1} parent=5 // pred_check_branch
        %141 = sbr.rel (%p139) target = $region20
      $region19: #{tpu_custom_call.1} parent=5 // pred_region
        // Predicated region
        $region21: #{tpu_custom_call.1} parent=19 // pred_check
          %p142 = pneg %p75
        $region22: #{tpu_custom_call.1} parent=19 // pred_check_branch
          %144 = sbr.rel (%p142) target = $region24
        $region23: #{tpu_custom_call.1} parent=19 // pred_region
          %s145 = sand.u32 %s65, 1
          %s146 = scalar_lea.sflag [#allocation6], %s145
          %s147 = sand.u32 %s65, 1
          %s148 = smul.addr %s147, 64
          %s149 = scalar_lea.vmem [#allocation5], %s148
          %s150 = smul.u32 8, %s22
          %152 = vsyncadd %s146, 0
          %s153 = smul.addr %s23, 8
          %s154 = sadd.s32 %s150, %s153
          %s155 = smul.addr %s154, 8
          %s156 = scalar_lea.hbm %s1, %s155
          %s158 = sshll.u32 %s156, 4
          %s159 = int_to_ptr.hbm [resolvable:$true] %s158
          %s160 = sshll.u32 %s149, 4
          %s161 = int_to_ptr.vmem [resolvable:$true] %s160
          %163 = dma.hbm_to_vmem [thread:$0]  %s159, 1024, %s161, %s146
        $region24: #{tpu_custom_call.1} parent=19 // pred_fallthru
          _
      $region20: #{tpu_custom_call.1} parent=5 // pred_fallthru
        _
      %p164 = scmp.le.s32.totalorder 1, %s15
      %p165 = scmp.lt.s32.totalorder %s15, 3
      %p166 = pnand %p164, %p165
      %p167 = pneg %p166
      // Predicated region
      $region25: #{tpu_custom_call.1} parent=5 // pred_check
        _
      $region26: #{tpu_custom_call.1} parent=5 // pred_check_branch
        %169 = sbr.rel (%p166) target = $region28
      $region27: #{tpu_custom_call.1} parent=5 // pred_region
        %s170 = ssub.s32 %s15, 1
        // Predicated region
        $region29: #{tpu_custom_call.1} parent=27 // pred_check
          %p171 = pneg %p53
        $region30: #{tpu_custom_call.1} parent=27 // pred_check_branch
          %173 = sbr.rel (%p171) target = $region32
        $region31: #{tpu_custom_call.1} parent=27 // pred_region
          %175 = dma.done [#allocation3], 128
        $region32: #{tpu_custom_call.1} parent=27 // pred_fallthru
          _
        %s176 = sand.u32 %s68, 1
        %s177 = scalar_lea.sflag [#allocation6], %s176
        %s178 = sand.u32 %s68, 1
        %s179 = smul.addr %s178, 64
        %s180 = scalar_lea.vmem [#allocation5], %s179
        // Predicated region
        $region33: #{tpu_custom_call.1} parent=27 // pred_check
          %p181 = pneg %p81
        $region34: #{tpu_custom_call.1} parent=27 // pred_check_branch
          %183 = sbr.rel (%p181) target = $region36
        $region35: #{tpu_custom_call.1} parent=27 // pred_region
          %185 = dma.done %s177, 1024
        $region36: #{tpu_custom_call.1} parent=27 // pred_fallthru
          _
        %p186 = pneg %p53
        %p187 = pneg %p50
        %s188 = sand.u32 %s68, 1
        %s189 = scalar_lea.sflag [#allocation6], %s188
        %s190 = sand.u32 %s68, 1
        %s191 = smul.addr %s190, 64
        %s192 = scalar_lea.vmem [#allocation5], %s191
        %p193 = pneg %p81
        %p194 = pneg %p78
        %p195 = pneg %p109
        %p196 = pneg %p106
        %s197 = sand.u32 %s96, 1
        %s198 = scalar_lea.sflag [#allocation4], %s197
        %s199 = sand.u32 %s96, 1
        %s200 = smul.addr %s199, 64
        %s201 = scalar_lea.vmem [#allocation7], %s200
        %s202 = smul.u32 8, %s24
        %s203 = smul.u32 8, %s24
        %s204 = smul.u32 8, %s24
        %v205 = vld [vmem:[%s180] sm:$0xff]
        %v206 = vld [vmem:[%s180 + $0x8] sm:$0xff]
        %v207 = vld [vmem:[%s180 + $0x10] sm:$0xff]
        %v208 = vld [vmem:[%s180 + $0x18] sm:$0xff]
        %v209 = vld [vmem:[%s180 + $0x20] sm:$0xff]
        %v210 = vld [vmem:[%s180 + $0x28] sm:$0xff]
        %v211 = vld [vmem:[%s180 + $0x30] sm:$0xff]
        %v212 = vld [vmem:[%s180 + $0x38] sm:$0xff]
        %v213 = vld [vmem:[#allocation2] sm:$0xff]
        %v215 = vperm.slane %v213, 0
        %v216 = vperm.slane %v213, 1
        %v217 = vperm.slane %v213, 2
        %v218 = vperm.slane %v213, 3
        %v219 = vperm.slane %v213, 4
        %v220 = vperm.slane %v213, 5
        %v221 = vperm.slane %v213, 6
        %v222 = vperm.slane %v213, 7
        %v231 = vmul.f32 %v205, %v215
        %v232 = vmul.f32 %v206, %v216
        %v233 = vmul.f32 %v207, %v217
        %v234 = vmul.f32 %v208, %v218
        %v235 = vmul.f32 %v209, %v219
        %v236 = vmul.f32 %v210, %v220
        %v237 = vmul.f32 %v211, %v221
        %v238 = vmul.f32 %v212, %v222
        %239 = vst [vmem:[%s201] sm:$0xff] %v231
        %240 = vst [vmem:[%s201 + $0x8] sm:$0xff] %v232
        %241 = vst [vmem:[%s201 + $0x10] sm:$0xff] %v233
        %242 = vst [vmem:[%s201 + $0x18] sm:$0xff] %v234
        %243 = vst [vmem:[%s201 + $0x20] sm:$0xff] %v235
        %244 = vst [vmem:[%s201 + $0x28] sm:$0xff] %v236
        %245 = vst [vmem:[%s201 + $0x30] sm:$0xff] %v237
        %246 = vst [vmem:[%s201 + $0x38] sm:$0xff] %v238
        %s247 = sand.u32 %s96, 1
        %s248 = scalar_lea.sflag [#allocation4], %s247
        %s249 = sand.u32 %s96, 1
        %s250 = smul.addr %s249, 64
        %s251 = scalar_lea.vmem [#allocation7], %s250
        // Predicated region
        $region37: #{tpu_custom_call.1} parent=27 // pred_check
          %p252 = pneg %p106
        $region38: #{tpu_custom_call.1} parent=27 // pred_check_branch
          %254 = sbr.rel (%p252) target = $region40
        $region39: #{tpu_custom_call.1} parent=27 // pred_region
          %s255 = smul.u32 8, %s24
          %257 = vsyncadd %s248, 0
          %s258 = smul.addr %s25, 8
          %s259 = sadd.s32 %s255, %s258
          %s260 = smul.addr %s259, 8
          %s261 = scalar_lea.hbm %s2, %s260
          %s263 = sshll.u32 %s251, 4
          %s264 = int_to_ptr.vmem [resolvable:$true] %s263
          %s265 = sshll.u32 %s261, 4
          %s266 = int_to_ptr.hbm [resolvable:$true] %s265
          %268 = dma.vmem_to_hbm [thread:$0]  %s264, 1024, %s266, %s248
        $region40: #{tpu_custom_call.1} parent=27 // pred_fallthru
          _
      $region28: #{tpu_custom_call.1} parent=5 // pred_fallthru
        _
      %p269 = scmp.le.s32.totalorder 2, %s15
      // Predicated region
      $region41: #{tpu_custom_call.1} parent=5 // pred_check
        %p270 = pneg %p269
      $region42: #{tpu_custom_call.1} parent=5 // pred_check_branch
        %272 = sbr.rel (%p270) target = $region44
      $region43: #{tpu_custom_call.1} parent=5 // pred_region
        %s273 = ssub.s32 %s15, 2
        // Predicated region
        $region45: #{tpu_custom_call.1} parent=43 // pred_check
          %p274 = pneg %p112
        $region46: #{tpu_custom_call.1} parent=43 // pred_check_branch
          %276 = sbr.rel (%p274) target = $region48
        $region47: #{tpu_custom_call.1} parent=43 // pred_region
          %s277 = sand.u32 %s97, 1
          %s278 = scalar_lea.sflag [#allocation4], %s277
          %s279 = sand.u32 %s97, 1
          %s280 = smul.addr %s279, 64
          %s281 = scalar_lea.vmem [#allocation7], %s280
          %283 = dma.done %s278, 1024
        $region48: #{tpu_custom_call.1} parent=43 // pred_fallthru
          _
      $region44: #{tpu_custom_call.1} parent=5 // pred_fallthru
        _
    $region6: #{tpu_custom_call.1} parent=1 // loop_footer
      %s19 = sadd.s32 1, %s15
    $region7: #{tpu_custom_call.1} parent=1 // loop_footer_branch
      %14 = sbr.rel target = $region3
    $region8: #{tpu_custom_call.1} parent=1 // loop_exit
      _
    %284 = vsyncpa [#allocation3], 1
    %s285 = scalar_lea.sflag [#allocation3], 1
    %286 = vsyncpa %s285, 1
    %287 = vsyncpa [#allocation6], 1
    %s288 = scalar_lea.sflag [#allocation6], 1
    %289 = vsyncpa %s288, 1
    %290 = vsyncpa [#allocation4], 1
    %s291 = scalar_lea.sflag [#allocation4], 1
    %292 = vsyncpa %s291, 1

</llo_original>
